<compile_context>
chip_gen: v7x
topology: tpu7x:2x2x1
jax: 0.10.0
libtpu: 0.0.40
codegen_flags: <defaults>
</compile_context>

<pallas_src>
import jax
import jax.numpy as jnp
from jax.experimental import pallas as pl
from jax.experimental.pallas import tpu as pltpu


# -----------------------------------------------------------------------------
# Pallas kernel: fused two-tower MLP, BN pre-folded, bf16 streaming,
# lane-dense [2, TB] output.
# -----------------------------------------------------------------------------
def _esmm_kernel(x_ref, w1_ref, b1_ref, w2_ref, b2_ref, w3_ref, b3_ref, out_ref):
    # x: [TB, E] bf16; weights bf16 (resident); biases f32 (BN folded in).
    x = x_ref[...]

    # Layer 1: both towers fused along the output axis ([E, 2*h1]).
    h = jnp.dot(x, w1_ref[...], preferred_element_type=jnp.float32) + b1_ref[...]
    h = jnp.maximum(h, 0.0)                          # ReLU (Dropout = identity at inference)

    # Layer 2: block-diagonal weight keeps the two towers independent.
    h = jnp.dot(h.astype(jnp.bfloat16), w2_ref[...],
                preferred_element_type=jnp.float32) + b2_ref[...]
    h = jnp.maximum(h, 0.0)

    # Output layer, padded to 128 lanes (col 0 = ctr logit, col 1 = cvr logit,
    # cols 2..127 zero) -> [TB, 128] f32.
    logits = jnp.dot(h.astype(jnp.bfloat16), w3_ref[...],
                     preferred_element_type=jnp.float32) + b3_ref[...]

    # Vreg-aligned transpose puts the batch on the lane axis: [128, TB].
    lt = logits.T
    p = jax.nn.sigmoid(lt[0:2, :])                   # row 0 = ctr, row 1 = cvr
    ctr = p[0:1, :]
    out_ref[0:1, :] = ctr                            # ctr_pred
    out_ref[1:2, :] = ctr * p[1:2, :]                # ctcvr_pred = ctr * cvr


def _round_up(x, m):
    return ((x + m - 1) // m) * m


def esmm_forward_pallas(embed_x, fused_params, *, tb=1024):
    """embed_x: [B, E] (bf16 preferred); fused_params: (w1, b1, w2, b2, w3, b3).

    Returns [B, 2] float32: column 0 = ctr_pred, column 1 = ctcvr_pred,
    matching the torch module's output layout.
    """
    w1, b1, w2, b2, w3, b3 = fused_params
    B, E = embed_x.shape
    x = embed_x if embed_x.dtype == jnp.bfloat16 else embed_x.astype(jnp.bfloat16)

    # Tile selection:
    #  * tiny batches -> a single tile of round_up(B, 8) rows (no 256x padding).
    #  * otherwise tiles are multiples of 128 (output lane dim of the [2, tb]
    #    block must be 128-aligned) and we keep >= 2 grid steps when possible
    #    so the "parallel" axis spans both TensorCores on v7x.
    rows8 = _round_up(B, 8)
    if rows8 <= 128:
        tb_eff = rows8
    else:
        tb_eff = min(max(tb, 128), _round_up(B, 128))
        if pl.cdiv(B, tb_eff) < 2 and tb_eff >= 256:
            tb_eff = _round_up(pl.cdiv(tb_eff, 2), 128)
    num_tiles = pl.cdiv(B, tb_eff)
    b_pad = num_tiles * tb_eff

    const = lambda i: (0, 0)   # weights/biases: same block every grid step (resident)
    in_specs = [
        pl.BlockSpec((tb_eff, E), lambda i: (i, 0)),   # embed_x tile (last block may be partial)
        pl.BlockSpec(w1.shape, const),
        pl.BlockSpec(b1.shape, const),
        pl.BlockSpec(w2.shape, const),
        pl.BlockSpec(b2.shape, const),
        pl.BlockSpec(w3.shape, const),
        pl.BlockSpec(b3.shape, const),
    ]
    out_specs = pl.BlockSpec((2, tb_eff), lambda i: (0, i))   # lane-dense output tile

    flops = 2 * b_pad * (w1.shape[0] * w1.shape[1]
                         + w2.shape[0] * w2.shape[1]
                         + w3.shape[0] * w3.shape[1])
    weight_bytes = sum(int(a.size) * a.dtype.itemsize for a in (w1, b1, w2, b2, w3, b3))
    bytes_accessed = B * E * 2 + 2 * b_pad * 4 + weight_bytes

    out = pl.pallas_call(
        _esmm_kernel,
        out_shape=jax.ShapeDtypeStruct((2, b_pad), jnp.float32),  # keep f32 for fidelity
        grid=(num_tiles,),
        in_specs=in_specs,
        out_specs=out_specs,
        compiler_params=pltpu.CompilerParams(
            dimension_semantics=("parallel",),       # megacore sharding on v7x
            vmem_limit_bytes=32 * 1024 * 1024,       # safe on v5e/v6e/v7x; usage is small
        ),
        cost_estimate=pl.CostEstimate(
            flops=flops, transcendentals=2 * b_pad, bytes_accessed=bytes_accessed),
    )(x, w1, b1, w2, b2, w3, b3)

    # Padded columns (from the partial last batch block) are dropped here.
    return out[:, :B].T      # [B, 2] to match the torch module's output layout


# -----------------------------------------------------------------------------
# Parameter construction & prep (mirrors the torch module, BN in eval mode)
# -----------------------------------------------------------------------------
def _fold_bn(gamma, beta, mean, var, eps=1e-5):
    scale = gamma / jnp.sqrt(var + eps)
    shift = beta - mean * scale
    return scale, shift


def make_tower_params(key, in_dim, mlp_dims):
    """MultiLayerPerceptron(in_dim, mlp_dims, dropout) with output_layer -> 1."""
    ks = jax.random.split(key, 16)
    h1, h2 = mlp_dims
    w1 = jax.random.normal(ks[0], (in_dim, h1), jnp.float32) * 0.1
    b1 = jax.random.normal(ks[1], (1, h1), jnp.float32) * 0.1
    g1 = 1.0 + 0.1 * jax.random.normal(ks[2], (1, h1), jnp.float32)
    be1 = 0.1 * jax.random.normal(ks[3], (1, h1), jnp.float32)
    m1 = 0.1 * jax.random.normal(ks[4], (1, h1), jnp.float32)
    v1 = 1.0 + 0.1 * jax.random.uniform(ks[5], (1, h1), jnp.float32)
    s1, t1 = _fold_bn(g1, be1, m1, v1)
    w2 = jax.random.normal(ks[6], (h1, h2), jnp.float32) * 0.1
    b2 = jax.random.normal(ks[7], (1, h2), jnp.float32) * 0.1
    g2 = 1.0 + 0.1 * jax.random.normal(ks[8], (1, h2), jnp.float32)
    be2 = 0.1 * jax.random.normal(ks[9], (1, h2), jnp.float32)
    m2 = 0.1 * jax.random.normal(ks[10], (1, h2), jnp.float32)
    v2 = 1.0 + 0.1 * jax.random.uniform(ks[11], (1, h2), jnp.float32)
    s2, t2 = _fold_bn(g2, be2, m2, v2)
    w3 = jax.random.normal(ks[12], (h2, 1), jnp.float32) * 0.1
    b3 = jax.random.normal(ks[13], (1, 1), jnp.float32) * 0.1
    return (w1, b1, s1, t1, w2, b2, s2, t2, w3, b3)


def fuse_towers(ctr_p, cvr_p, out_pad=128):
    """Fold eval-mode BN into weights/biases and fuse the two towers into one
    block-diagonal MLP.  The output layer is padded to `out_pad` columns so the
    in-kernel [TB, out_pad] -> [out_pad, TB] transpose is vreg-aligned; only
    column 0 (ctr logit) and column 1 (cvr logit) are non-zero."""
    def fold(p):
        w1, b1, s1, t1, w2, b2, s2, t2, w3, b3 = p
        return (w1 * s1, b1 * s1 + t1, w2 * s2, b2 * s2 + t2, w3, b3)

    c = fold(ctr_p)
    v = fold(cvr_p)
    h1 = c[0].shape[1]
    h2 = c[2].shape[1]
    z12 = jnp.zeros((h1, h2), jnp.float32)

    w1 = jnp.concatenate([c[0], v[0]], axis=1)                       # [E, 2h1]
    b1 = jnp.concatenate([c[1], v[1]], axis=1)                       # [1, 2h1]
    w2 = jnp.block([[c[2], z12], [z12, v[2]]])                       # [2h1, 2h2]
    b2 = jnp.concatenate([c[3], v[3]], axis=1)                       # [1, 2h2]
    w3 = jnp.zeros((2 * h2, out_pad), jnp.float32)
    w3 = w3.at[:h2, 0].set(c[4][:, 0]).at[h2:, 1].set(v[4][:, 0])    # [2h2, 128]
    b3 = jnp.zeros((1, out_pad), jnp.float32)
    b3 = b3.at[0, 0].set(c[5][0, 0]).at[0, 1].set(v[5][0, 0])        # [1, 128]

    return (w1.astype(jnp.bfloat16), b1,
            w2.astype(jnp.bfloat16), b2,
            w3.astype(jnp.bfloat16), b3)


def features_embedding(x_idx, table, offsets, embed_output_dim):
    # TODO(synk): data-dependent embedding gather kept in plain-JAX glue (tiny
    # table); the MLP hot path is the Pallas kernel.  Table stays bf16 so no
    # extra full-array cast pass is needed before the kernel.
    idx = x_idx + offsets[None, :]                      # [B, F]
    emb = jnp.take(table, idx, axis=0)                  # [B, F, D]
    return emb.reshape(x_idx.shape[0], embed_output_dim)


# -----------------------------------------------------------------------------
# References (for correctness checks)
# -----------------------------------------------------------------------------
def esmm_forward_ref_quant(embed_x, fused_params):
    """Mirrors the kernel's fused / bf16 computation in plain JAX."""
    w1, b1, w2, b2, w3, b3 = fused_params
    x = embed_x.astype(jnp.bfloat16)
    h = jnp.maximum(jnp.dot(x, w1, preferred_element_type=jnp.float32) + b1, 0.0)
    h = jnp.maximum(jnp.dot(h.astype(jnp.bfloat16), w2,
                            preferred_element_type=jnp.float32) + b2, 0.0)
    logits = jnp.dot(h.astype(jnp.bfloat16), w3,
                     preferred_element_type=jnp.float32) + b3
    p = jax.nn.sigmoid(logits[:, 0:2])
    ctr, cvr = p[:, 0:1], p[:, 1:2]
    return jnp.concatenate([ctr, ctr * cvr], axis=-1)


def _tower_ref_f32(x, p):
    w1, b1, s1, t1, w2, b2, s2, t2, w3, b3 = p
    h = jnp.maximum((x @ w1 + b1) * s1 + t1, 0.0)
    h = jnp.maximum((h @ w2 + b2) * s2 + t2, 0.0)
    return jax.nn.sigmoid(h @ w3 + b3)


def esmm_forward_ref_f32(embed_x, ctr_p, cvr_p):
    ctr = _tower_ref_f32(embed_x, ctr_p)
    cvr = _tower_ref_f32(embed_x, cvr_p)
    return jnp.concatenate([ctr, ctr * cvr], axis=-1)


# -----------------------------------------------------------------------------
if __name__ == "__main__":
    # Model hyperparameters (mirrors __init__(field_dims, embed_dim, mlp_dims, dropout))
    field_dims = (10, 20, 30, 40)
    embed_dim = 8
    mlp_dims = (32, 16)
    batch = 2
    num_fields = len(field_dims)
    embed_output_dim = num_fields * embed_dim

    key = jax.random.PRNGKey(0)
    k_emb, k_ctr, k_cvr, k_x = jax.random.split(key, 4)

    # FeaturesEmbedding: single table of size sum(field_dims) x embed_dim with offsets.
    total_dim = sum(field_dims)
    table_f32 = jax.random.normal(k_emb, (total_dim, embed_dim), jnp.float32) * 0.1
    table = table_f32.astype(jnp.bfloat16)              # bf16 table -> bf16 embed_x
    offsets = jnp.array((0,) + tuple(jnp.cumsum(jnp.array(field_dims))[:-1].tolist()),
                        dtype=jnp.int32)

    ctr_params = make_tower_params(k_ctr, embed_output_dim, mlp_dims)
    cvr_params = make_tower_params(k_cvr, embed_output_dim, mlp_dims)
    fused_params = fuse_towers(ctr_params, cvr_params)

    # Input: [batch, num_fields] integer feature ids (per-field index).
    maxvals = jnp.array(field_dims, dtype=jnp.int32)
    x = (jax.random.randint(k_x, (batch, num_fields), 0, 1 << 30) % maxvals).astype(jnp.int32)

    embed_x = features_embedding(x, table, offsets, embed_output_dim)          # bf16 [B, E]
    embed_x_f32 = features_embedding(x, table_f32, offsets, embed_output_dim)  # f32 reference path

    out = esmm_forward_pallas(embed_x, fused_params, tb=1024)
    out = jax.block_until_ready(out)
    assert out.shape == (batch, 2), out.shape

    # Strict check vs a reference that mirrors the kernel's bf16/fused math.
    ref_q = esmm_forward_ref_quant(embed_x, fused_params)
    assert jnp.allclose(out, ref_q, atol=2e-4, rtol=2e-4), (out, ref_q)

    # Loose check vs the original full-f32 two-tower semantics (bf16 quant error).
    ref_f32 = esmm_forward_ref_f32(embed_x_f32, ctr_params, cvr_params)
    assert jnp.allclose(out, ref_f32, atol=3e-2, rtol=3e-2), (out, ref_f32)

    print("KERNEL_OK")
</pallas_src>

<mosaic_0001>
module attributes {stable_mosaic.version = 11 : i64} {
  func.func @_esmm_kernel(%arg0: i32, %arg1: memref<8x32xbf16, #tpu.memory_space<vmem>>, %arg2: memref<32x64xbf16, #tpu.memory_space<vmem>>, %arg3: memref<1x64xf32, #tpu.memory_space<vmem>>, %arg4: memref<64x32xbf16, #tpu.memory_space<vmem>>, %arg5: memref<1x32xf32, #tpu.memory_space<vmem>>, %arg6: memref<32x128xbf16, #tpu.memory_space<vmem>>, %arg7: memref<1x128xf32, #tpu.memory_space<vmem>>, %arg8: memref<2x8xf32, #tpu.memory_space<vmem>>) attributes {dimension_semantics = [#tpu.dimension_semantics<parallel>], iteration_bounds = array<i64: 1>, scalar_prefetch = 0 : i64, scratch_operands = 0 : i64, tpu.core_type = #tpu.core_type<tc>, window_params = [{transform_indices = @transform_0, window_bounds = array<i64: 8, 32>}, {pipeline_mode = #tpu.pipeline_mode<synchronous>, transform_indices = @transform_1, window_bounds = array<i64: 32, 64>}, {pipeline_mode = #tpu.pipeline_mode<synchronous>, transform_indices = @transform_2, window_bounds = array<i64: 1, 64>}, {pipeline_mode = #tpu.pipeline_mode<synchronous>, transform_indices = @transform_3, window_bounds = array<i64: 64, 32>}, {pipeline_mode = #tpu.pipeline_mode<synchronous>, transform_indices = @transform_4, window_bounds = array<i64: 1, 32>}, {pipeline_mode = #tpu.pipeline_mode<synchronous>, transform_indices = @transform_5, window_bounds = array<i64: 32, 128>}, {pipeline_mode = #tpu.pipeline_mode<synchronous>, transform_indices = @transform_6, window_bounds = array<i64: 1, 128>}, {transform_indices = @transform_7, window_bounds = array<i64: 2, 8>}]} {
    %c0 = arith.constant 0 : index
    %c0_0 = arith.constant 0 : index
    %0 = vector.load %arg1[%c0, %c0_0] : memref<8x32xbf16, #tpu.memory_space<vmem>>, vector<8x32xbf16>
    %c0_1 = arith.constant 0 : index
    %c0_2 = arith.constant 0 : index
    %1 = vector.load %arg2[%c0_1, %c0_2] : memref<32x64xbf16, #tpu.memory_space<vmem>>, vector<32x64xbf16>
    %cst = arith.constant dense<0.000000e+00> : vector<8x64xf32>
    %2 = tpu.matmul %0, %1, %cst {dimension_numbers = #tpu.dot_dimension_numbers<[1], [0], [0], [1], [0, 0, 1, 1], [], []>} : vector<8x32xbf16>, vector<32x64xbf16>, vector<8x64xf32> -> vector<8x64xf32>
    %c0_3 = arith.constant 0 : index
    %c0_4 = arith.constant 0 : index
    %3 = vector.load %arg3[%c0_3, %c0_4] : memref<1x64xf32, #tpu.memory_space<vmem>>, vector<1x64xf32>
    %4 = vector.broadcast %3 : vector<1x64xf32> to vector<8x64xf32>
    %5 = arith.addf %2, %4 : vector<8x64xf32>
    %cst_5 = arith.constant 0.000000e+00 : f32
    %6 = vector.broadcast %cst_5 : f32 to vector<8x64xf32>
    %7 = arith.maximumf %5, %6 : vector<8x64xf32>
    %8 = arith.truncf %7 : vector<8x64xf32> to vector<8x64xbf16>
    %c0_6 = arith.constant 0 : index
    %c0_7 = arith.constant 0 : index
    %9 = vector.load %arg4[%c0_6, %c0_7] : memref<64x32xbf16, #tpu.memory_space<vmem>>, vector<64x32xbf16>
    %cst_8 = arith.constant dense<0.000000e+00> : vector<8x32xf32>
    %10 = tpu.matmul %8, %9, %cst_8 {dimension_numbers = #tpu.dot_dimension_numbers<[1], [0], [0], [1], [0, 0, 1, 1], [], []>} : vector<8x64xbf16>, vector<64x32xbf16>, vector<8x32xf32> -> vector<8x32xf32>
    %c0_9 = arith.constant 0 : index
    %c0_10 = arith.constant 0 : index
    %11 = vector.load %arg5[%c0_9, %c0_10] : memref<1x32xf32, #tpu.memory_space<vmem>>, vector<1x32xf32>
    %12 = vector.broadcast %11 : vector<1x32xf32> to vector<8x32xf32>
    %13 = arith.addf %10, %12 : vector<8x32xf32>
    %cst_11 = arith.constant 0.000000e+00 : f32
    %14 = vector.broadcast %cst_11 : f32 to vector<8x32xf32>
    %15 = arith.maximumf %13, %14 : vector<8x32xf32>
    %16 = arith.truncf %15 : vector<8x32xf32> to vector<8x32xbf16>
    %c0_12 = arith.constant 0 : index
    %c0_13 = arith.constant 0 : index
    %17 = vector.load %arg6[%c0_12, %c0_13] : memref<32x128xbf16, #tpu.memory_space<vmem>>, vector<32x128xbf16>
    %cst_14 = arith.constant dense<0.000000e+00> : vector<8x128xf32>
    %18 = tpu.matmul %16, %17, %cst_14 {dimension_numbers = #tpu.dot_dimension_numbers<[1], [0], [0], [1], [0, 0, 1, 1], [], []>} : vector<8x32xbf16>, vector<32x128xbf16>, vector<8x128xf32> -> vector<8x128xf32>
    %c0_15 = arith.constant 0 : index
    %c0_16 = arith.constant 0 : index
    %19 = vector.load %arg7[%c0_15, %c0_16] : memref<1x128xf32, #tpu.memory_space<vmem>>, vector<1x128xf32>
    %20 = vector.broadcast %19 : vector<1x128xf32> to vector<8x128xf32>
    %21 = arith.addf %18, %20 : vector<8x128xf32>
    %22 = tpu.transpose %21, [1, 0] : vector<8x128xf32> -> vector<128x8xf32>
    %23 = vector.extract_strided_slice %22 {offsets = [0, 0], sizes = [2, 8], strides = [1, 1]} : vector<128x8xf32> to vector<2x8xf32>
    %24 = arith.negf %23 : vector<2x8xf32>
    %25 = math.exp %24 : vector<2x8xf32>
    %cst_17 = arith.constant 1.000000e+00 : f32
    %26 = vector.broadcast %cst_17 : f32 to vector<2x8xf32>
    %27 = arith.addf %26, %25 : vector<2x8xf32>
    %28 = arith.divf %26, %27 : vector<2x8xf32>
    %29 = vector.extract_strided_slice %28 {offsets = [0, 0], sizes = [1, 8], strides = [1, 1]} : vector<2x8xf32> to vector<1x8xf32>
    %c0_18 = arith.constant 0 : index
    %c0_19 = arith.constant 0 : index
    %30 = vector.load %arg8[%c0_18, %c0_19] : memref<2x8xf32, #tpu.memory_space<vmem>>, vector<1x8xf32>
    tpu.vector_store %arg8[%c0_18, %c0_19], %29 {strides = array<i32>} : memref<2x8xf32, #tpu.memory_space<vmem>>, vector<1x8xf32>,
    %31 = vector.extract_strided_slice %28 {offsets = [1, 0], sizes = [1, 8], strides = [1, 1]} : vector<2x8xf32> to vector<1x8xf32>
    %32 = arith.mulf %29, %31 : vector<1x8xf32>
    %c1 = arith.constant 1 : index
    %c0_20 = arith.constant 0 : index
    %33 = vector.load %arg8[%c1, %c0_20] : memref<2x8xf32, #tpu.memory_space<vmem>>, vector<1x8xf32>
    tpu.vector_store %arg8[%c1, %c0_20], %32 {strides = array<i32>} : memref<2x8xf32, #tpu.memory_space<vmem>>, vector<1x8xf32>,
    return
  }
  func.func @transform_0(%arg0: i32) -> (i32, i32) {
    %c0_i32 = arith.constant 0 : i32
    %c0_i32_0 = arith.constant 0 : i32
    return %arg0, %c0_i32 : i32, i32
  }
  func.func @transform_1(%arg0: i32) -> (i32, i32) {
    %c0_i32 = arith.constant 0 : i32
    %c0_i32_0 = arith.constant 0 : i32
    %c0_i32_1 = arith.constant 0 : i32
    return %c0_i32, %c0_i32_0 : i32, i32
  }
  func.func @transform_2(%arg0: i32) -> (i32, i32) {
    %c0_i32 = arith.constant 0 : i32
    %c0_i32_0 = arith.constant 0 : i32
    %c0_i32_1 = arith.constant 0 : i32
    return %c0_i32, %c0_i32_0 : i32, i32
  }
  func.func @transform_3(%arg0: i32) -> (i32, i32) {
    %c0_i32 = arith.constant 0 : i32
    %c0_i32_0 = arith.constant 0 : i32
    %c0_i32_1 = arith.constant 0 : i32
    return %c0_i32, %c0_i32_0 : i32, i32
  }
  func.func @transform_4(%arg0: i32) -> (i32, i32) {
    %c0_i32 = arith.constant 0 : i32
    %c0_i32_0 = arith.constant 0 : i32
    %c0_i32_1 = arith.constant 0 : i32
    return %c0_i32, %c0_i32_0 : i32, i32
  }
  func.func @transform_5(%arg0: i32) -> (i32, i32) {
    %c0_i32 = arith.constant 0 : i32
    %c0_i32_0 = arith.constant 0 : i32
    %c0_i32_1 = arith.constant 0 : i32
    return %c0_i32, %c0_i32_0 : i32, i32
  }
  func.func @transform_6(%arg0: i32) -> (i32, i32) {
    %c0_i32 = arith.constant 0 : i32
    %c0_i32_0 = arith.constant 0 : i32
    %c0_i32_1 = arith.constant 0 : i32
    return %c0_i32, %c0_i32_0 : i32, i32
  }
  func.func @transform_7(%arg0: i32) -> (i32, i32) {
    %c0_i32 = arith.constant 0 : i32
    %c0_i32_0 = arith.constant 0 : i32
    return %c0_i32, %arg0 : i32, i32
  }
}

</mosaic_0001>

<llo_original>
// kernel: tpu_custom_call.1
$region0: #{tpu_custom_call.1}
  #allocation0 [shape = 'u32[]', space=smem, size = 0x4, offset = 0x4, fixed_abs, tag = 'smem constant byte address 0x4 - core index']
  #allocation1 [shape = 'u32[144,128]{1,0:T(1,128)}', space=vmem, size = 0x12000, scoped, tag = 'internal scratch']
  %s0 = inlined_call_operand.vmem [shape: bf16[2,32], index: 0, kind: input, shape index: {}]
  %s1 = inlined_call_operand.vmem [shape: bf16[32,64], index: 1, kind: input, shape index: {}]
  %s2 = inlined_call_operand.vmem [shape: f32[1,64], index: 2, kind: input, shape index: {}]
  %s3 = inlined_call_operand.vmem [shape: bf16[64,32], index: 3, kind: input, shape index: {}]
  %s4 = inlined_call_operand.vmem [shape: f32[1,32], index: 4, kind: input, shape index: {}]
  %s5 = inlined_call_operand.vmem [shape: bf16[32,128], index: 5, kind: input, shape index: {}]
  %s6 = inlined_call_operand.vmem [shape: f32[1,128], index: 6, kind: input, shape index: {}]
  %s7 = inlined_call_operand.hbm [shape: f32[2,8], index: 7, kind: output, shape index: {}]
  %s8 = sld [smem:[#allocation0]]
  $region38: #{tpu_custom_call.1} parent=0
    _
  %s10 = ssub.s32 1, %s8
  %s11 = scalar_select 0, %s10, %s8
  $region1: #{tpu_custom_call.1} parent=0
    #allocation2 [shape = 'u8[1024]{0}', space=vmem, size = 0x400, scoped, tag = 'output window, operand 0, single buffered']
    #allocation3 [shape = 's32[1]{0}', space=sflag, size = 0x4, scoped, tag = 'scoped memory for tpu_custom_call.1']
    %12 = vsyncpa [#allocation3], 0
    // Predicated region
    $region2: #{tpu_custom_call.1} parent=1 // pred_check
      _
    $region3: #{tpu_custom_call.1} parent=1 // pred_check_branch
      %14 = sbr.rel (0) target = $region5
    $region4: #{tpu_custom_call.1} parent=1 // pred_region
      _
    $region5: #{tpu_custom_call.1} parent=1 // pred_fallthru
      _
    // Predicated region
    $region6: #{tpu_custom_call.1} parent=1 // pred_check
      _
    $region7: #{tpu_custom_call.1} parent=1 // pred_check_branch
      %16 = sbr.rel (0) target = $region9
    $region8: #{tpu_custom_call.1} parent=1 // pred_region
      _
    $region9: #{tpu_custom_call.1} parent=1 // pred_fallthru
      _
    // Predicated region
    $region10: #{tpu_custom_call.1} parent=1 // pred_check
      _
    $region11: #{tpu_custom_call.1} parent=1 // pred_check_branch
      %18 = sbr.rel (0) target = $region13
    $region12: #{tpu_custom_call.1} parent=1 // pred_region
      _
    $region13: #{tpu_custom_call.1} parent=1 // pred_fallthru
      _
    // Predicated region
    $region14: #{tpu_custom_call.1} parent=1 // pred_check
      _
    $region15: #{tpu_custom_call.1} parent=1 // pred_check_branch
      %20 = sbr.rel (0) target = $region17
    $region16: #{tpu_custom_call.1} parent=1 // pred_region
      _
    $region17: #{tpu_custom_call.1} parent=1 // pred_fallthru
      _
    // Predicated region
    $region18: #{tpu_custom_call.1} parent=1 // pred_check
      _
    $region19: #{tpu_custom_call.1} parent=1 // pred_check_branch
      %22 = sbr.rel (0) target = $region21
    $region20: #{tpu_custom_call.1} parent=1 // pred_region
      _
    $region21: #{tpu_custom_call.1} parent=1 // pred_fallthru
      _
    // Predicated region
    $region22: #{tpu_custom_call.1} parent=1 // pred_check
      _
    $region23: #{tpu_custom_call.1} parent=1 // pred_check_branch
      %24 = sbr.rel (0) target = $region25
    $region24: #{tpu_custom_call.1} parent=1 // pred_region
      _
    $region25: #{tpu_custom_call.1} parent=1 // pred_fallthru
      _
    // Predicated region
    $region26: #{tpu_custom_call.1} parent=1 // pred_check
      _
    $region27: #{tpu_custom_call.1} parent=1 // pred_check_branch
      %26 = sbr.rel (0) target = $region29
    $region28: #{tpu_custom_call.1} parent=1 // pred_region
      _
    $region29: #{tpu_custom_call.1} parent=1 // pred_fallthru
      _
    %v28 = vld [vmem:[%s0] sm:$0x1]
    %v29 = vld [vmem:[%s0 + $0x1] sm:$0x1]
    %v30 = vld [vmem:[%s0 + $0x2] sm:$0x1]
    %v31 = vld [vmem:[%s0 + $0x3] sm:$0x1]
    %v32 = vld [vmem:[%s1] sm:$0xf]
    %v33 = vld [vmem:[%s1 + $0x4] sm:$0xf]
    %v34 = vld [vmem:[%s1 + $0x8] sm:$0xf]
    %v35 = vld [vmem:[%s1 + $0xc] sm:$0xf]
    %v36 = vld [vmem:[%s2] sm:$0x1]
    %v38 = vlaneseq
    %v39 = vshrl.u32 %v38, 7
    %v40 = vsub.s32 0, %v39
    %v41 = vrot.slane %v36, %v40
    %v47 = vcombine.low %v28, %v29
    %v48 = vcombine.low %v30, %v31
    %v50 = vunpack.c.l.s4 1966171168
    %v51 = vunpack.c.0.s8 %v50
    %v52 = vlaneseq
    %v53 = vshrl.u32 %v52, 7
    %v54 = vsub.s32 %v51, %v53
    %v55 = vrot.slane %v47, %v54
    %v57 = vunpack.c.l.s4 1966171168
    %v58 = vunpack.c.0.s8 %v57
    %v59 = vlaneseq
    %v60 = vshrl.u32 %v59, 7
    %v61 = vsub.s32 %v58, %v60
    %v62 = vrot.slane %v48, %v61
    %v63 = vcombine.low %v55, %v62
    %v65 = vunpack.c.l.s4 1966171168
    %v66 = vunpack.c.0.s8 %v65
    %v67 = vlaneseq
    %v68 = vshrl.u32 %v67, 7
    %v69 = vsub.s32 %v66, %v68
    %v70 = vrot.slane %v63, %v69
    %v75 = vunpack.c.l.b16 %v32
    %v76 = vunpack.c.l.b16 %v33
    %v77 = vunpack.c.l.b16 %v34
    %v78 = vunpack.c.l.b16 %v35
    %v79 = vpack.c.b16 %v76, %v75
    %v80 = vpack.c.b16 %v78, %v77
    %vm83 = vcmask 261120
    %v85 = vsel %vm83, %v70, 0
    %87 = vmatprep.subr.bf16.mxu0 0
    %88 = vmatpush1.bf16.msra.mxu0 %v79
    %89 = vmatprep.subr.bf16.mxu0 0
    %90 = vmatpush1.bf16.msra.mxu0 %v80
    %91 = vmatprep.subr.bf16.mxu0 0
    %92 = vmatpush1.bf16.msra.mxu0 0
    %93 = vmatprep.subr.bf16.mxu0 0
    %94 = vmatpush1.bf16.msra.mxu0 0
    %95 = vmatprep.subr.bf16.mxu0 0
    %96 = vmatpush1.bf16.msra.mxu0 0
    %97 = vmatprep.subr.bf16.mxu0 0
    %98 = vmatpush1.bf16.msra.mxu0 0
    %99 = vmatprep.subr.bf16.mxu0 0
    %100 = vmatpush1.bf16.msra.mxu0 0
    %101 = vmatprep.subr.bf16.mxu0 0
    %102 = vmatpush1.bf16.msra.mxu0 0
    %103 = vmatprep.subr.bf16.mxu0 0
    %104 = vmatpush1.bf16.msra.mxu0 0
    %105 = vmatprep.subr.bf16.mxu0 0
    %106 = vmatpush1.bf16.msra.mxu0 0
    %107 = vmatprep.subr.bf16.mxu0 0
    %108 = vmatpush1.bf16.msra.mxu0 0
    %109 = vmatprep.subr.bf16.mxu0 0
    %110 = vmatpush1.bf16.msra.mxu0 0
    %111 = vmatprep.subr.bf16.mxu0 0
    %112 = vmatpush1.bf16.msra.mxu0 0
    %113 = vmatprep.subr.bf16.mxu0 0
    %114 = vmatpush1.bf16.msra.mxu0 0
    %115 = vmatprep.subr.bf16.mxu0 0
    %116 = vmatpush1.bf16.msra.mxu0 0
    %117 = vmatprep.subr.bf16.mxu0 0
    %118 = vmatpush1.bf16.msra.mxu0 0
    %119 = vmatprep.mubr.bf16.mxu0 0
    %120 = vmatmul.mubr.bf16.gmra.mrb[0].mxu0 %v85
    %v121 = vpop.f32.mrb[0].mxu0
    %v122 = vadd.f32 %v41, %v121
    %v123 = vpop.f32.mrb[0].mxu0
    %v124 = vpop.f32.mrb[0].mxu0
    %v125 = vpop.f32.mrb[0].mxu0
    %126 = vdwg.mxu0
    %v127 = vmax.f32 %v122, 0.0
    %v128 = vpack.c.bf16 %v127, %v127
    %v129 = vld [vmem:[%s3] sm:$0xf]
    %v130 = vld [vmem:[%s3 + $0x4] sm:$0xf]
    %v131 = vld [vmem:[%s3 + $0x8] sm:$0xf]
    %v132 = vld [vmem:[%s3 + $0xc] sm:$0xf]
    %v133 = vld [vmem:[%s3 + $0x10] sm:$0xf]
    %v134 = vld [vmem:[%s3 + $0x14] sm:$0xf]
    %v135 = vld [vmem:[%s3 + $0x18] sm:$0xf]
    %v136 = vld [vmem:[%s3 + $0x1c] sm:$0xf]
    %v137 = vld [vmem:[%s4] sm:$0x1]
    %v139 = vlaneseq
    %v140 = vshrl.u32 %v139, 7
    %v141 = vsub.s32 0, %v140
    %v142 = vrot.slane %v137, %v141
    %v152 = vunpack.c.l.b16 %v129
    %v153 = vunpack.c.l.b16 %v130
    %v154 = vunpack.c.l.b16 %v131
    %v155 = vunpack.c.l.b16 %v132
    %v156 = vunpack.c.l.b16 %v133
    %v157 = vunpack.c.l.b16 %v134
    %v158 = vunpack.c.l.b16 %v135
    %v159 = vunpack.c.l.b16 %v136
    %v160 = vpack.c.b16 %v153, %v152
    %v161 = vpack.c.b16 %v155, %v154
    %v162 = vpack.c.b16 %v157, %v156
    %v163 = vpack.c.b16 %v159, %v158
    %vm168 = vcmask 523264
    %v170 = vsel %vm168, %v128, 0
    %172 = vmatprep.subr.bf16.mxu0 0
    %173 = vmatpush1.bf16.msra.mxu0 %v160
    %174 = vmatprep.subr.bf16.mxu0 0
    %175 = vmatpush1.bf16.msra.mxu0 %v161
    %176 = vmatprep.subr.bf16.mxu0 0
    %177 = vmatpush1.bf16.msra.mxu0 %v162
    %178 = vmatprep.subr.bf16.mxu0 0
    %179 = vmatpush1.bf16.msra.mxu0 %v163
    %180 = vmatprep.subr.bf16.mxu0 0
    %181 = vmatpush1.bf16.msra.mxu0 0
    %182 = vmatprep.subr.bf16.mxu0 0
    %183 = vmatpush1.bf16.msra.mxu0 0
    %184 = vmatprep.subr.bf16.mxu0 0
    %185 = vmatpush1.bf16.msra.mxu0 0
    %186 = vmatprep.subr.bf16.mxu0 0
    %187 = vmatpush1.bf16.msra.mxu0 0
    %188 = vmatprep.subr.bf16.mxu0 0
    %189 = vmatpush1.bf16.msra.mxu0 0
    %190 = vmatprep.subr.bf16.mxu0 0
    %191 = vmatpush1.bf16.msra.mxu0 0
    %192 = vmatprep.subr.bf16.mxu0 0
    %193 = vmatpush1.bf16.msra.mxu0 0
    %194 = vmatprep.subr.bf16.mxu0 0
    %195 = vmatpush1.bf16.msra.mxu0 0
    %196 = vmatprep.subr.bf16.mxu0 0
    %197 = vmatpush1.bf16.msra.mxu0 0
    %198 = vmatprep.subr.bf16.mxu0 0
    %199 = vmatpush1.bf16.msra.mxu0 0
    %200 = vmatprep.subr.bf16.mxu0 0
    %201 = vmatpush1.bf16.msra.mxu0 0
    %202 = vmatprep.subr.bf16.mxu0 0
    %203 = vmatpush1.bf16.msra.mxu0 0
    %204 = vmatprep.mubr.bf16.mxu0 0
    %205 = vmatmul.mubr.bf16.gmra.mrb[0].mxu0 %v170
    %v206 = vpop.f32.mrb[0].mxu0
    %v207 = vadd.f32 %v142, %v206
    %v208 = vpop.f32.mrb[0].mxu0
    %v209 = vpop.f32.mrb[0].mxu0
    %v210 = vpop.f32.mrb[0].mxu0
    %211 = vdwg.mxu0
    %v212 = vmax.f32 %v207, 0.0
    %v213 = vpack.c.bf16 %v212, %v212
    %v214 = vld [vmem:[%s5] sm:$0xf]
    %v215 = vld [vmem:[%s5 + $0x4] sm:$0xf]
    %v216 = vld [vmem:[%s5 + $0x8] sm:$0xf]
    %v217 = vld [vmem:[%s5 + $0xc] sm:$0xf]
    %v218 = vld [vmem:[%s6] sm:$0x1]
    %v220 = vlaneseq
    %v221 = vshrl.u32 %v220, 7
    %v222 = vsub.s32 0, %v221
    %v223 = vrot.slane %v218, %v222
    %v229 = vunpack.c.l.b16 %v214
    %v230 = vunpack.c.l.b16 %v215
    %v231 = vunpack.c.l.b16 %v216
    %v232 = vunpack.c.l.b16 %v217
    %v233 = vpack.c.b16 %v230, %v229
    %v234 = vpack.c.b16 %v232, %v231
    %v238 = vsel %vm83, %v213, 0
    %240 = vmatprep.subr.bf16.mxu0 0
    %241 = vmatpush1.bf16.msra.mxu0 %v233
    %242 = vmatprep.subr.bf16.mxu0 0
    %243 = vmatpush1.bf16.msra.mxu0 %v234
    %244 = vmatprep.subr.bf16.mxu0 0
    %245 = vmatpush1.bf16.msra.mxu0 0
    %246 = vmatprep.subr.bf16.mxu0 0
    %247 = vmatpush1.bf16.msra.mxu0 0
    %248 = vmatprep.subr.bf16.mxu0 0
    %249 = vmatpush1.bf16.msra.mxu0 0
    %250 = vmatprep.subr.bf16.mxu0 0
    %251 = vmatpush1.bf16.msra.mxu0 0
    %252 = vmatprep.subr.bf16.mxu0 0
    %253 = vmatpush1.bf16.msra.mxu0 0
    %254 = vmatprep.subr.bf16.mxu0 0
    %255 = vmatpush1.bf16.msra.mxu0 0
    %256 = vmatprep.subr.bf16.mxu0 0
    %257 = vmatpush1.bf16.msra.mxu0 0
    %258 = vmatprep.subr.bf16.mxu0 0
    %259 = vmatpush1.bf16.msra.mxu0 0
    %260 = vmatprep.subr.bf16.mxu0 0
    %261 = vmatpush1.bf16.msra.mxu0 0
    %262 = vmatprep.subr.bf16.mxu0 0
    %263 = vmatpush1.bf16.msra.mxu0 0
    %264 = vmatprep.subr.bf16.mxu0 0
    %265 = vmatpush1.bf16.msra.mxu0 0
    %266 = vmatprep.subr.bf16.mxu0 0
    %267 = vmatpush1.bf16.msra.mxu0 0
    %268 = vmatprep.subr.bf16.mxu0 0
    %269 = vmatpush1.bf16.msra.mxu0 0
    %270 = vmatprep.subr.bf16.mxu0 0
    %271 = vmatpush1.bf16.msra.mxu0 0
    %272 = vmatprep.mubr.bf16.mxu0 0
    %273 = vmatmul.mubr.bf16.gmra.mrb[0].mxu0 %v238
    %v274 = vpop.f32.mrb[0].mxu0
    %v275 = vadd.f32 %v223, %v274
    %v276 = vpop.f32.mrb[0].mxu0
    %v277 = vpop.f32.mrb[0].mxu0
    %v278 = vpop.f32.mrb[0].mxu0
    %279 = vdwg.mxu0
    %280 = vxpose.xlu0.b32.start [1/16] %v275, 128
    %281 = vxpose.xlu0.b32.cont [2/16] 0.0, 128
    %282 = vxpose.xlu0.b32.cont [3/16] 0.0, 128
    %283 = vxpose.xlu0.b32.cont [4/16] 0.0, 128
    %284 = vxpose.xlu0.b32.cont [5/16] 0.0, 128
    %285 = vxpose.xlu0.b32.cont [6/16] 0.0, 128
    %286 = vxpose.xlu0.b32.cont [7/16] 0.0, 128
    %287 = vxpose.xlu0.b32.cont [8/16] 0.0, 128
    %288 = vxpose.xlu0.b32.cont [9/16] 0.0, 128
    %289 = vxpose.xlu0.b32.cont [10/16] 0.0, 128
    %290 = vxpose.xlu0.b32.cont [11/16] 0.0, 128
    %291 = vxpose.xlu0.b32.cont [12/16] 0.0, 128
    %292 = vxpose.xlu0.b32.cont [13/16] 0.0, 128
    %293 = vxpose.xlu0.b32.cont [14/16] 0.0, 128
    %294 = vxpose.xlu0.b32.cont [15/16] 0.0, 128
    %295 = vxpose.xlu0.b32.end [16/16] 0.0, 128
    %v296 = vpop.trf.xlu0
    %v297 = vpop.trf.xlu0
    %v298 = vpop.trf.xlu0
    %v299 = vpop.trf.xlu0
    %v300 = vpop.trf.xlu0
    %v301 = vpop.trf.xlu0
    %v302 = vpop.trf.xlu0
    %v303 = vpop.trf.xlu0
    %v304 = vpop.trf.xlu0
    %v305 = vpop.trf.xlu0
    %v306 = vpop.trf.xlu0
    %v307 = vpop.trf.xlu0
    %v308 = vpop.trf.xlu0
    %v309 = vpop.trf.xlu0
    %v310 = vpop.trf.xlu0
    %v311 = vpop.trf.xlu0
    %v312 = vxor.u32 %v296, 2147483648
    %v313 = vmul.f32 %v312, 1.442695
    %v314 = vpow.pop %v313
    %v315 = vadd.f32 %v314, 1.0
    %v316 = vrcp.pop %v315
    %v317 = vmul.f32 1.0, %v316
    %vm318 = vcmask 57344
    %319 = vst.msk [vmem:[#allocation2] sm:$0x1] %vm318, %v317
    %v321 = vrot.slane %v317, 1
    %v323 = vmul.f32 %v317, %v321
    %324 = vst.msk [vmem:[#allocation2 + $0x1] sm:$0x1] %vm318, %v323
    // Predicated region
    $region30: #{tpu_custom_call.1} parent=1 // pred_check
      _
    $region31: #{tpu_custom_call.1} parent=1 // pred_check_branch
      %326 = sbr.rel (0) target = $region33
    $region32: #{tpu_custom_call.1} parent=1 // pred_region
      %s328 = ssub.s32 32, 32
      %329 = vsyncadd [#allocation3], %s328
      %s331 = sshll.u32 [#allocation2], 4
      %s332 = int_to_ptr.vmem [resolvable:$true] %s331
      %334 = dma.vmem_to_hbm [thread:$0]  %s332, 32, %s7, [#allocation3]
    $region33: #{tpu_custom_call.1} parent=1 // pred_fallthru
      _
    // Predicated region
    $region34: #{tpu_custom_call.1} parent=1 // pred_check
      _
    $region35: #{tpu_custom_call.1} parent=1 // pred_check_branch
      %336 = sbr.rel (0) target = $region37
    $region36: #{tpu_custom_call.1} parent=1 // pred_region
      %337 = dma.done [#allocation3], 32
    $region37: #{tpu_custom_call.1} parent=1 // pred_fallthru
      _
    %338 = vsyncpa [#allocation3], 1

</llo_original>
